<compile_context>
chip_gen: v7x
topology: tpu7x:2x2x1
jax: 0.10.0
libtpu: 0.0.40
codegen_flags: <defaults>
</compile_context>

<pallas_src>
import math
import numpy as np
import jax
import jax.numpy as jnp
from jax.experimental import pallas as pl
from jax.experimental.pallas import tpu as pltpu


# ------------------------------ helpers ------------------------------------
def _elu(h):
    # ELU(alpha=1). Clamp the exp argument so padded/garbage rows and large
    # positive h never hit the EUP with huge arguments.
    return jnp.where(h > 0, h, jnp.exp(jnp.minimum(h, 0.0)) - 1.0)


def _mix_fwd_idx(D, bd, gap):
    """Gather index: mixed[:, p] = y[:, idx[p]] for view(-1,bd,gap).transpose(2,1)."""
    assert D % (bd * gap) == 0, "mixing permutation must tile the feature dim"
    return np.arange(D).reshape(-1, bd, gap).transpose(0, 2, 1).reshape(D)


def _mix_inv_idx(D, bd, gap):
    """Gather index for the inverse mix view(-1,gap,bd).transpose(2,1)."""
    assert D % (bd * gap) == 0, "mixing permutation must tile the feature dim"
    return np.arange(D).reshape(-1, gap, bd).transpose(0, 2, 1).reshape(D)


def _perm_matrix(gather_idx):
    """P such that (y @ P)[:, p] == y[:, gather_idx[p]] (exact in f32)."""
    D = gather_idx.shape[0]
    P = np.zeros((D, D), dtype=np.float32)
    P[gather_idx, np.arange(D)] = 1.0
    return jnp.asarray(P)


def _group_block_diag(w, G):
    """(n_blocks, di, do) -> (n_groups, G*di, G*do) block-diagonal group weights."""
    nb, di, do = w.shape
    ng = nb // G
    w = w.reshape(ng, G, di, do)
    eye = jnp.eye(G, dtype=w.dtype)
    out = jnp.einsum('ngio,gh->ngiho', w, eye)        # (ng, G, di, G, do)
    return out.reshape(ng, G * di, G * do)


# ----------------------------- Pallas kernel -------------------------------
def _make_mixer_kernel(L, n_groups, grp_in, comp_is_id, mlp_dtype):
    n_q = sum(1 for c in comp_is_id if not c)

    def kernel(*refs):
        x_ref = refs[0]
        w_refs = refs[1:1 + 4 * L]                     # per layer: w1g,b1g,w2g,b2g
        q_refs = refs[1 + 4 * L:1 + 4 * L + n_q]       # composed inter-layer perms
        o_ref = refs[1 + 4 * L + n_q]
        acc_ref = refs[1 + 4 * L + n_q + 1]            # VMEM scratch (T, D)

        y = x_ref[...].astype(jnp.float32)             # (T, D)
        qi = 0
        for l in range(L):
            w1_ref, b1_ref, w2_ref, b2_ref = w_refs[4 * l:4 * l + 4]
            if n_groups == 1:
                z = y
                h = jnp.dot(z.astype(mlp_dtype), w1_ref[0],
                            preferred_element_type=jnp.float32) + b1_ref[0]
                h = _elu(h)
                y = jnp.dot(h.astype(mlp_dtype), w2_ref[0],
                            preferred_element_type=jnp.float32) + b2_ref[0] + z
            else:
                # write lane-aligned group slabs straight into VMEM scratch
                for g in range(n_groups):
                    z = y[:, g * grp_in:(g + 1) * grp_in]        # (T, G*bd)
                    h = jnp.dot(z.astype(mlp_dtype), w1_ref[g],
                                preferred_element_type=jnp.float32) + b1_ref[g]
                    h = _elu(h)
                    acc_ref[:, g * grp_in:(g + 1) * grp_in] = (
                        jnp.dot(h.astype(mlp_dtype), w2_ref[g],
                                preferred_element_type=jnp.float32)
                        + b2_ref[g] + z)
                y = acc_ref[...]
            # composed permutation inv_l ∘ fwd_{l+1} (identity compositions skipped)
            if l < L - 1 and not comp_is_id[l]:
                y = jnp.dot(y, q_refs[qi][...], preferred_element_type=jnp.float32)
                qi += 1
        o_ref[...] = y.astype(o_ref.dtype)

    return kernel


def mixer_forward_pallas(x, params, gaps, block_dim, *, tile_bs=256,
                         use_bf16_mlp=False):
    bs, D = x.shape
    bd = block_dim
    n_blocks = D // bd
    hd = params[0][0].shape[-1]
    L = len(params)
    mlp_dtype = jnp.bfloat16 if use_bf16_mlp else jnp.float32

    # --- permutation bookkeeping (only the composed, non-identity perms go
    # --- into the kernel; boundary perms become HBM-side gathers) -----------
    fwd = [_mix_fwd_idx(D, bd, g) for g in gaps]
    inv = [_mix_inv_idx(D, bd, g) for g in gaps]
    ident = np.arange(D)
    comp = [inv[l][fwd[l + 1]] for l in range(L - 1)]
    comp_is_id = [bool(np.array_equal(c, ident)) for c in comp]
    n_q = sum(1 for c in comp_is_id if not c)

    # --- block grouping: keep grouped matmul slabs lane-dense ---------------
    G = max(1, min(n_blocks, max(1, 128 // bd)))
    while n_blocks % G:
        G -= 1
    n_groups = n_blocks // G
    grp_in, grp_hid = G * bd, G * hd

    # --- batch tiling --------------------------------------------------------
    T = bs if bs <= tile_bs else tile_bs
    if bs >= 16 and pl.cdiv(bs, T) < 2:
        # ensure >=2 grid steps so ("parallel",) can use both v7x TensorCores
        half = (bs + 1) // 2
        T = ((half + 7) // 8) * 8
    grid = (pl.cdiv(bs, T),)

    # --- kernel operands -----------------------------------------------------
    w_inputs = []
    w_specs = []
    for (w1, b1, w2, b2) in params:
        w_inputs += [
            _group_block_diag(w1, G).astype(mlp_dtype),
            b1.reshape(n_groups, 1, grp_hid).astype(jnp.float32),
            _group_block_diag(w2, G).astype(mlp_dtype),
            b2.reshape(n_groups, 1, grp_in).astype(jnp.float32),
        ]
        w_specs += [
            pl.BlockSpec((n_groups, grp_in, grp_hid), lambda i: (0, 0, 0)),
            pl.BlockSpec((n_groups, 1, grp_hid), lambda i: (0, 0, 0)),
            pl.BlockSpec((n_groups, grp_hid, grp_in), lambda i: (0, 0, 0)),
            pl.BlockSpec((n_groups, 1, grp_in), lambda i: (0, 0, 0)),
        ]
    for l in range(L - 1):
        if not comp_is_id[l]:
            w_inputs.append(_perm_matrix(comp[l]))
            w_specs.append(pl.BlockSpec((D, D), lambda i: (0, 0)))

    weight_bytes = sum(int(a.size) * a.dtype.itemsize for a in w_inputs)
    act_bytes = T * D * 4
    vmem_needed = 2 * weight_bytes + 5 * act_bytes + (1 << 20)
    vmem_limit = int(min(max(vmem_needed, 32 << 20), 128 << 20))

    flops = int(4 * bs * grp_in * grp_hid * n_groups * L + 2 * bs * D * D * n_q)
    transcendentals = int(L * bs * n_blocks * hd)
    bytes_accessed = int(4 * 2 * bs * D + weight_bytes)

    kernel = _make_mixer_kernel(L, n_groups, grp_in, comp_is_id, mlp_dtype)
    call = pl.pallas_call(
        kernel,
        out_shape=jax.ShapeDtypeStruct((bs, D), x.dtype),
        grid=grid,
        in_specs=[pl.BlockSpec((T, D), lambda i: (i, 0))] + w_specs,
        out_specs=pl.BlockSpec((T, D), lambda i: (i, 0)),
        scratch_shapes=[pltpu.VMEM((T, D), jnp.float32)],
        compiler_params=pltpu.CompilerParams(
            dimension_semantics=("parallel",),
            vmem_limit_bytes=vmem_limit),
        cost_estimate=pl.CostEstimate(flops=flops,
                                      transcendentals=transcendentals,
                                      bytes_accessed=bytes_accessed),
    )

    # fold the first forward mix / last inverse mix into HBM-side gathers
    x_in = x if np.array_equal(fwd[0], ident) else jnp.take(
        x, jnp.asarray(fwd[0]), axis=1)
    out = call(x_in, *w_inputs)
    if not np.array_equal(inv[-1], ident):
        out = jnp.take(out, jnp.asarray(inv[-1]), axis=1)
    return out


# --------------------------- module construction ---------------------------
def _int_ceil_log(a, base):
    k, v = 0, 1
    while v < a:
        v *= base
        k += 1
    return k


def init_block_mlp_mixer(key, input_dim, block_dim, hidden_layers_ratio=(2,)):
    assert input_dim % block_dim == 0, "Input dim must be even number"
    num_layers = _int_ceil_log(input_dim, block_dim)
    ratios = [1] + list(hidden_layers_ratio) + [1]
    layer_dims = [int(r * block_dim) for r in ratios]       # [bd, 2*bd, bd]
    n_blocks = input_dim // block_dim

    gaps = []
    for i in range(num_layers):
        gap = block_dim ** i
        if gap * block_dim <= input_dim:
            gaps.append(gap)
        else:
            gaps.append(int(math.ceil(input_dim / block_dim)))

    params = []
    for _ in range(num_layers):
        key, k1, k2 = jax.random.split(key, 3)
        w1 = jax.random.normal(k1, (n_blocks, layer_dims[0], layer_dims[1]),
                               dtype=jnp.float32)
        b1 = jnp.zeros((n_blocks, 1, layer_dims[1]), dtype=jnp.float32)
        w2 = jax.random.normal(k2, (n_blocks, layer_dims[1], layer_dims[2]),
                               dtype=jnp.float32)
        b2 = jnp.zeros((n_blocks, 1, layer_dims[2]), dtype=jnp.float32)
        params.append((w1, b1, w2, b2))
    return params, gaps


# --------------------------- pure-JAX reference -----------------------------
def mixer_forward_ref(x, params, gaps, block_dim):
    bs, D = x.shape
    bd = block_dim
    n_blocks = D // bd
    y = x
    for (w1, b1, w2, b2), gap in zip(params, gaps):
        # y.view(-1, bd, gap).transpose(2,1).contiguous().view(bs, -1)
        y = y.reshape(-1, bd, gap).transpose(0, 2, 1).reshape(bs, D)
        # BlockMLP: per-block MLP + residual
        z = y.reshape(bs, n_blocks, bd).transpose(1, 0, 2)    # (n_blocks, bs, bd)
        h = jnp.einsum('nbi,nio->nbo', z, w1) + b1
        h = _elu(h)
        z = jnp.einsum('nbi,nio->nbo', h, w2) + b2 + z
        y = z.transpose(1, 0, 2).reshape(bs, D)
        # y.view(-1, gap, bd).transpose(2,1)
        y = y.reshape(-1, gap, bd).transpose(0, 2, 1).reshape(bs, D)
    return y


# ---------------------------------- main ------------------------------------
if __name__ == "__main__":
    key = jax.random.PRNGKey(0)
    bs, input_dim, block_dim = 2, 16, 4          # num_layers = 2, gaps = [1, 4]

    kx, kp = jax.random.split(key)
    x = jax.random.normal(kx, (bs, input_dim), dtype=jnp.float32)
    params, gaps = init_block_mlp_mixer(kp, input_dim, block_dim,
                                        hidden_layers_ratio=(2,))

    out = mixer_forward_pallas(x, params, gaps, block_dim)
    out = jax.block_until_ready(out)

    ref = mixer_forward_ref(x, params, gaps, block_dim)
    ref = jax.block_until_ready(ref)

    assert out.shape == (bs, input_dim)
    assert jnp.allclose(out, ref, atol=1e-5, rtol=1e-5), "mismatch vs reference"
    print("KERNEL_OK")
</pallas_src>

<mosaic_0001>
module attributes {stable_mosaic.version = 11 : i64} {
  func.func @kernel(%arg0: i32, %arg1: memref<2x16xf32, #tpu.memory_space<vmem>>, %arg2: memref<1x16x32xf32, #tpu.memory_space<vmem>>, %arg3: memref<1x1x32xf32, #tpu.memory_space<vmem>>, %arg4: memref<1x32x16xf32, #tpu.memory_space<vmem>>, %arg5: memref<1x1x16xf32, #tpu.memory_space<vmem>>, %arg6: memref<1x16x32xf32, #tpu.memory_space<vmem>>, %arg7: memref<1x1x32xf32, #tpu.memory_space<vmem>>, %arg8: memref<1x32x16xf32, #tpu.memory_space<vmem>>, %arg9: memref<1x1x16xf32, #tpu.memory_space<vmem>>, %arg10: memref<16x16xf32, #tpu.memory_space<vmem>>, %arg11: memref<2x16xf32, #tpu.memory_space<vmem>>, %arg12: memref<2x16xf32, #tpu.memory_space<vmem>>) attributes {dimension_semantics = [#tpu.dimension_semantics<parallel>], iteration_bounds = array<i64: 1>, scalar_prefetch = 0 : i64, scratch_operands = 1 : i64, tpu.core_type = #tpu.core_type<tc>, window_params = [{transform_indices = @transform_0, window_bounds = array<i64: 2, 16>}, {pipeline_mode = #tpu.pipeline_mode<synchronous>, transform_indices = @transform_1, window_bounds = array<i64: 1, 16, 32>}, {pipeline_mode = #tpu.pipeline_mode<synchronous>, transform_indices = @transform_2, window_bounds = array<i64: 1, 1, 32>}, {pipeline_mode = #tpu.pipeline_mode<synchronous>, transform_indices = @transform_3, window_bounds = array<i64: 1, 32, 16>}, {pipeline_mode = #tpu.pipeline_mode<synchronous>, transform_indices = @transform_4, window_bounds = array<i64: 1, 1, 16>}, {pipeline_mode = #tpu.pipeline_mode<synchronous>, transform_indices = @transform_5, window_bounds = array<i64: 1, 16, 32>}, {pipeline_mode = #tpu.pipeline_mode<synchronous>, transform_indices = @transform_6, window_bounds = array<i64: 1, 1, 32>}, {pipeline_mode = #tpu.pipeline_mode<synchronous>, transform_indices = @transform_7, window_bounds = array<i64: 1, 32, 16>}, {pipeline_mode = #tpu.pipeline_mode<synchronous>, transform_indices = @transform_8, window_bounds = array<i64: 1, 1, 16>}, {pipeline_mode = #tpu.pipeline_mode<synchronous>, transform_indices = @transform_9, window_bounds = array<i64: 16, 16>}, {transform_indices = @transform_10, window_bounds = array<i64: 2, 16>}]} {
    %c0 = arith.constant 0 : index
    %c0_0 = arith.constant 0 : index
    %0 = vector.load %arg1[%c0, %c0_0] : memref<2x16xf32, #tpu.memory_space<vmem>>, vector<2x16xf32>
    %c0_1 = arith.constant 0 : index
    %c0_2 = arith.constant 0 : index
    %c0_3 = arith.constant 0 : index
    %1 = vector.load %arg2[%c0_1, %c0_2, %c0_3] : memref<1x16x32xf32, #tpu.memory_space<vmem>>, vector<1x16x32xf32>
    %2 = vector.shape_cast %1 : vector<1x16x32xf32> to vector<16x32xf32>
    %cst = arith.constant dense<0.000000e+00> : vector<2x32xf32>
    %3 = tpu.matmul %0, %2, %cst {dimension_numbers = #tpu.dot_dimension_numbers<[1], [0], [0], [1], [0, 0, 1, 1], [], []>} : vector<2x16xf32>, vector<16x32xf32>, vector<2x32xf32> -> vector<2x32xf32>
    %c0_4 = arith.constant 0 : index
    %c0_5 = arith.constant 0 : index
    %c0_6 = arith.constant 0 : index
    %4 = vector.load %arg3[%c0_4, %c0_5, %c0_6] : memref<1x1x32xf32, #tpu.memory_space<vmem>>, vector<1x1x32xf32>
    %5 = vector.shape_cast %4 : vector<1x1x32xf32> to vector<1x32xf32>
    %6 = vector.broadcast %5 : vector<1x32xf32> to vector<2x32xf32>
    %7 = arith.addf %3, %6 : vector<2x32xf32>
    %cst_7 = arith.constant 0.000000e+00 : f32
    %8 = vector.broadcast %cst_7 : f32 to vector<2x32xf32>
    %9 = arith.cmpf ogt, %7, %8 : vector<2x32xf32>
    %cst_8 = arith.constant 0.000000e+00 : f32
    %10 = vector.broadcast %cst_8 : f32 to vector<2x32xf32>
    %11 = arith.minimumf %7, %10 : vector<2x32xf32>
    %12 = math.exp %11 : vector<2x32xf32>
    %cst_9 = arith.constant 1.000000e+00 : f32
    %13 = vector.broadcast %cst_9 : f32 to vector<2x32xf32>
    %14 = arith.subf %12, %13 : vector<2x32xf32>
    %15 = arith.select %9, %7, %14 : vector<2x32xi1>, vector<2x32xf32>
    %c0_10 = arith.constant 0 : index
    %c0_11 = arith.constant 0 : index
    %c0_12 = arith.constant 0 : index
    %16 = vector.load %arg4[%c0_10, %c0_11, %c0_12] : memref<1x32x16xf32, #tpu.memory_space<vmem>>, vector<1x32x16xf32>
    %17 = vector.shape_cast %16 : vector<1x32x16xf32> to vector<32x16xf32>
    %cst_13 = arith.constant dense<0.000000e+00> : vector<2x16xf32>
    %18 = tpu.matmul %15, %17, %cst_13 {dimension_numbers = #tpu.dot_dimension_numbers<[1], [0], [0], [1], [0, 0, 1, 1], [], []>} : vector<2x32xf32>, vector<32x16xf32>, vector<2x16xf32> -> vector<2x16xf32>
    %c0_14 = arith.constant 0 : index
    %c0_15 = arith.constant 0 : index
    %c0_16 = arith.constant 0 : index
    %19 = vector.load %arg5[%c0_14, %c0_15, %c0_16] : memref<1x1x16xf32, #tpu.memory_space<vmem>>, vector<1x1x16xf32>
    %20 = vector.shape_cast %19 : vector<1x1x16xf32> to vector<1x16xf32>
    %21 = vector.broadcast %20 : vector<1x16xf32> to vector<2x16xf32>
    %22 = arith.addf %18, %21 : vector<2x16xf32>
    %23 = arith.addf %22, %0 : vector<2x16xf32>
    %c0_17 = arith.constant 0 : index
    %c0_18 = arith.constant 0 : index
    %24 = vector.load %arg10[%c0_17, %c0_18] : memref<16x16xf32, #tpu.memory_space<vmem>>, vector<16x16xf32>
    %cst_19 = arith.constant dense<0.000000e+00> : vector<2x16xf32>
    %25 = tpu.matmul %23, %24, %cst_19 {dimension_numbers = #tpu.dot_dimension_numbers<[1], [0], [0], [1], [0, 0, 1, 1], [], []>} : vector<2x16xf32>, vector<16x16xf32>, vector<2x16xf32> -> vector<2x16xf32>
    %c0_20 = arith.constant 0 : index
    %c0_21 = arith.constant 0 : index
    %c0_22 = arith.constant 0 : index
    %26 = vector.load %arg6[%c0_20, %c0_21, %c0_22] : memref<1x16x32xf32, #tpu.memory_space<vmem>>, vector<1x16x32xf32>
    %27 = vector.shape_cast %26 : vector<1x16x32xf32> to vector<16x32xf32>
    %cst_23 = arith.constant dense<0.000000e+00> : vector<2x32xf32>
    %28 = tpu.matmul %25, %27, %cst_23 {dimension_numbers = #tpu.dot_dimension_numbers<[1], [0], [0], [1], [0, 0, 1, 1], [], []>} : vector<2x16xf32>, vector<16x32xf32>, vector<2x32xf32> -> vector<2x32xf32>
    %c0_24 = arith.constant 0 : index
    %c0_25 = arith.constant 0 : index
    %c0_26 = arith.constant 0 : index
    %29 = vector.load %arg7[%c0_24, %c0_25, %c0_26] : memref<1x1x32xf32, #tpu.memory_space<vmem>>, vector<1x1x32xf32>
    %30 = vector.shape_cast %29 : vector<1x1x32xf32> to vector<1x32xf32>
    %31 = vector.broadcast %30 : vector<1x32xf32> to vector<2x32xf32>
    %32 = arith.addf %28, %31 : vector<2x32xf32>
    %cst_27 = arith.constant 0.000000e+00 : f32
    %33 = vector.broadcast %cst_27 : f32 to vector<2x32xf32>
    %34 = arith.cmpf ogt, %32, %33 : vector<2x32xf32>
    %cst_28 = arith.constant 0.000000e+00 : f32
    %35 = vector.broadcast %cst_28 : f32 to vector<2x32xf32>
    %36 = arith.minimumf %32, %35 : vector<2x32xf32>
    %37 = math.exp %36 : vector<2x32xf32>
    %cst_29 = arith.constant 1.000000e+00 : f32
    %38 = vector.broadcast %cst_29 : f32 to vector<2x32xf32>
    %39 = arith.subf %37, %38 : vector<2x32xf32>
    %40 = arith.select %34, %32, %39 : vector<2x32xi1>, vector<2x32xf32>
    %c0_30 = arith.constant 0 : index
    %c0_31 = arith.constant 0 : index
    %c0_32 = arith.constant 0 : index
    %41 = vector.load %arg8[%c0_30, %c0_31, %c0_32] : memref<1x32x16xf32, #tpu.memory_space<vmem>>, vector<1x32x16xf32>
    %42 = vector.shape_cast %41 : vector<1x32x16xf32> to vector<32x16xf32>
    %cst_33 = arith.constant dense<0.000000e+00> : vector<2x16xf32>
    %43 = tpu.matmul %40, %42, %cst_33 {dimension_numbers = #tpu.dot_dimension_numbers<[1], [0], [0], [1], [0, 0, 1, 1], [], []>} : vector<2x32xf32>, vector<32x16xf32>, vector<2x16xf32> -> vector<2x16xf32>
    %c0_34 = arith.constant 0 : index
    %c0_35 = arith.constant 0 : index
    %c0_36 = arith.constant 0 : index
    %44 = vector.load %arg9[%c0_34, %c0_35, %c0_36] : memref<1x1x16xf32, #tpu.memory_space<vmem>>, vector<1x1x16xf32>
    %45 = vector.shape_cast %44 : vector<1x1x16xf32> to vector<1x16xf32>
    %46 = vector.broadcast %45 : vector<1x16xf32> to vector<2x16xf32>
    %47 = arith.addf %43, %46 : vector<2x16xf32>
    %48 = arith.addf %47, %25 : vector<2x16xf32>
    %c0_37 = arith.constant 0 : index
    %c0_38 = arith.constant 0 : index
    %49 = vector.load %arg11[%c0_37, %c0_38] : memref<2x16xf32, #tpu.memory_space<vmem>>, vector<2x16xf32>
    tpu.vector_store %arg11[%c0_37, %c0_38], %48 {strides = array<i32>} : memref<2x16xf32, #tpu.memory_space<vmem>>, vector<2x16xf32>,
    return
  }
  func.func @transform_0(%arg0: i32) -> (i32, i32) {
    %c0_i32 = arith.constant 0 : i32
    %c0_i32_0 = arith.constant 0 : i32
    return %arg0, %c0_i32 : i32, i32
  }
  func.func @transform_1(%arg0: i32) -> (i32, i32, i32) {
    %c0_i32 = arith.constant 0 : i32
    %c0_i32_0 = arith.constant 0 : i32
    %c0_i32_1 = arith.constant 0 : i32
    %c0_i32_2 = arith.constant 0 : i32
    return %c0_i32, %c0_i32_0, %c0_i32_1 : i32, i32, i32
  }
  func.func @transform_2(%arg0: i32) -> (i32, i32, i32) {
    %c0_i32 = arith.constant 0 : i32
    %c0_i32_0 = arith.constant 0 : i32
    %c0_i32_1 = arith.constant 0 : i32
    %c0_i32_2 = arith.constant 0 : i32
    return %c0_i32, %c0_i32_0, %c0_i32_1 : i32, i32, i32
  }
  func.func @transform_3(%arg0: i32) -> (i32, i32, i32) {
    %c0_i32 = arith.constant 0 : i32
    %c0_i32_0 = arith.constant 0 : i32
    %c0_i32_1 = arith.constant 0 : i32
    %c0_i32_2 = arith.constant 0 : i32
    return %c0_i32, %c0_i32_0, %c0_i32_1 : i32, i32, i32
  }
  func.func @transform_4(%arg0: i32) -> (i32, i32, i32) {
    %c0_i32 = arith.constant 0 : i32
    %c0_i32_0 = arith.constant 0 : i32
    %c0_i32_1 = arith.constant 0 : i32
    %c0_i32_2 = arith.constant 0 : i32
    return %c0_i32, %c0_i32_0, %c0_i32_1 : i32, i32, i32
  }
  func.func @transform_5(%arg0: i32) -> (i32, i32, i32) {
    %c0_i32 = arith.constant 0 : i32
    %c0_i32_0 = arith.constant 0 : i32
    %c0_i32_1 = arith.constant 0 : i32
    %c0_i32_2 = arith.constant 0 : i32
    return %c0_i32, %c0_i32_0, %c0_i32_1 : i32, i32, i32
  }
  func.func @transform_6(%arg0: i32) -> (i32, i32, i32) {
    %c0_i32 = arith.constant 0 : i32
    %c0_i32_0 = arith.constant 0 : i32
    %c0_i32_1 = arith.constant 0 : i32
    %c0_i32_2 = arith.constant 0 : i32
    return %c0_i32, %c0_i32_0, %c0_i32_1 : i32, i32, i32
  }
  func.func @transform_7(%arg0: i32) -> (i32, i32, i32) {
    %c0_i32 = arith.constant 0 : i32
    %c0_i32_0 = arith.constant 0 : i32
    %c0_i32_1 = arith.constant 0 : i32
    %c0_i32_2 = arith.constant 0 : i32
    return %c0_i32, %c0_i32_0, %c0_i32_1 : i32, i32, i32
  }
  func.func @transform_8(%arg0: i32) -> (i32, i32, i32) {
    %c0_i32 = arith.constant 0 : i32
    %c0_i32_0 = arith.constant 0 : i32
    %c0_i32_1 = arith.constant 0 : i32
    %c0_i32_2 = arith.constant 0 : i32
    return %c0_i32, %c0_i32_0, %c0_i32_1 : i32, i32, i32
  }
  func.func @transform_9(%arg0: i32) -> (i32, i32) {
    %c0_i32 = arith.constant 0 : i32
    %c0_i32_0 = arith.constant 0 : i32
    %c0_i32_1 = arith.constant 0 : i32
    return %c0_i32, %c0_i32_0 : i32, i32
  }
  func.func @transform_10(%arg0: i32) -> (i32, i32) {
    %c0_i32 = arith.constant 0 : i32
    %c0_i32_0 = arith.constant 0 : i32
    return %arg0, %c0_i32 : i32, i32
  }
}

</mosaic_0001>

<llo_original>
// kernel: tpu_custom_call.1
$region0: #{tpu_custom_call.1}
  #allocation0 [shape = 'u32[]', space=smem, size = 0x4, offset = 0x4, fixed_abs, tag = 'smem constant byte address 0x4 - core index']
  #allocation1 [shape = 'u32[144,128]{1,0:T(1,128)}', space=vmem, size = 0x12000, scoped, tag = 'internal scratch']
  #allocation2 [shape = 'f32[2,16]{1,0:T(2,128)}', space=vmem, size = 0x400, scoped, tag = 'scratch operand']
  %s0 = inlined_call_operand.vmem [shape: f32[2,16], index: 0, kind: input, shape index: {}]
  %s1 = inlined_call_operand.vmem [shape: f32[1,16,32], index: 1, kind: input, shape index: {}]
  %s2 = inlined_call_operand.vmem [shape: f32[1,1,32], index: 2, kind: input, shape index: {}]
  %s3 = inlined_call_operand.vmem [shape: f32[1,32,16], index: 3, kind: input, shape index: {}]
  %s4 = inlined_call_operand.vmem [shape: f32[1,1,16], index: 4, kind: input, shape index: {}]
  %s5 = inlined_call_operand.vmem [shape: f32[1,16,32], index: 5, kind: input, shape index: {}]
  %s6 = inlined_call_operand.vmem [shape: f32[1,1,32], index: 6, kind: input, shape index: {}]
  %s7 = inlined_call_operand.vmem [shape: f32[1,32,16], index: 7, kind: input, shape index: {}]
  %s8 = inlined_call_operand.vmem [shape: f32[1,1,16], index: 8, kind: input, shape index: {}]
  %s9 = inlined_call_operand.vmem [shape: f32[16,16], index: 9, kind: input, shape index: {}]
  %s10 = inlined_call_operand.hbm [shape: f32[2,16], index: 10, kind: output, shape index: {}]
  %s11 = sld [smem:[#allocation0]]
  $region50: #{tpu_custom_call.1} parent=0
    _
  %s13 = ssub.s32 1, %s11
  %s14 = scalar_select 0, %s13, %s11
  $region1: #{tpu_custom_call.1} parent=0
    #allocation3 [shape = 'u8[1024]{0}', space=vmem, size = 0x400, scoped, tag = 'output window, operand 0, single buffered']
    #allocation4 [shape = 's32[1]{0}', space=sflag, size = 0x4, scoped, tag = 'scoped memory for tpu_custom_call.1']
    %15 = vsyncpa [#allocation4], 0
    // Predicated region
    $region2: #{tpu_custom_call.1} parent=1 // pred_check
      _
    $region3: #{tpu_custom_call.1} parent=1 // pred_check_branch
      %17 = sbr.rel (0) target = $region5
    $region4: #{tpu_custom_call.1} parent=1 // pred_region
      _
    $region5: #{tpu_custom_call.1} parent=1 // pred_fallthru
      _
    // Predicated region
    $region6: #{tpu_custom_call.1} parent=1 // pred_check
      _
    $region7: #{tpu_custom_call.1} parent=1 // pred_check_branch
      %19 = sbr.rel (0) target = $region9
    $region8: #{tpu_custom_call.1} parent=1 // pred_region
      _
    $region9: #{tpu_custom_call.1} parent=1 // pred_fallthru
      _
    // Predicated region
    $region10: #{tpu_custom_call.1} parent=1 // pred_check
      _
    $region11: #{tpu_custom_call.1} parent=1 // pred_check_branch
      %21 = sbr.rel (0) target = $region13
    $region12: #{tpu_custom_call.1} parent=1 // pred_region
      _
    $region13: #{tpu_custom_call.1} parent=1 // pred_fallthru
      _
    // Predicated region
    $region14: #{tpu_custom_call.1} parent=1 // pred_check
      _
    $region15: #{tpu_custom_call.1} parent=1 // pred_check_branch
      %23 = sbr.rel (0) target = $region17
    $region16: #{tpu_custom_call.1} parent=1 // pred_region
      _
    $region17: #{tpu_custom_call.1} parent=1 // pred_fallthru
      _
    // Predicated region
    $region18: #{tpu_custom_call.1} parent=1 // pred_check
      _
    $region19: #{tpu_custom_call.1} parent=1 // pred_check_branch
      %25 = sbr.rel (0) target = $region21
    $region20: #{tpu_custom_call.1} parent=1 // pred_region
      _
    $region21: #{tpu_custom_call.1} parent=1 // pred_fallthru
      _
    // Predicated region
    $region22: #{tpu_custom_call.1} parent=1 // pred_check
      _
    $region23: #{tpu_custom_call.1} parent=1 // pred_check_branch
      %27 = sbr.rel (0) target = $region25
    $region24: #{tpu_custom_call.1} parent=1 // pred_region
      _
    $region25: #{tpu_custom_call.1} parent=1 // pred_fallthru
      _
    // Predicated region
    $region26: #{tpu_custom_call.1} parent=1 // pred_check
      _
    $region27: #{tpu_custom_call.1} parent=1 // pred_check_branch
      %29 = sbr.rel (0) target = $region29
    $region28: #{tpu_custom_call.1} parent=1 // pred_region
      _
    $region29: #{tpu_custom_call.1} parent=1 // pred_fallthru
      _
    // Predicated region
    $region30: #{tpu_custom_call.1} parent=1 // pred_check
      _
    $region31: #{tpu_custom_call.1} parent=1 // pred_check_branch
      %31 = sbr.rel (0) target = $region33
    $region32: #{tpu_custom_call.1} parent=1 // pred_region
      _
    $region33: #{tpu_custom_call.1} parent=1 // pred_fallthru
      _
    // Predicated region
    $region34: #{tpu_custom_call.1} parent=1 // pred_check
      _
    $region35: #{tpu_custom_call.1} parent=1 // pred_check_branch
      %33 = sbr.rel (0) target = $region37
    $region36: #{tpu_custom_call.1} parent=1 // pred_region
      _
    $region37: #{tpu_custom_call.1} parent=1 // pred_fallthru
      _
    // Predicated region
    $region38: #{tpu_custom_call.1} parent=1 // pred_check
      _
    $region39: #{tpu_custom_call.1} parent=1 // pred_check_branch
      %35 = sbr.rel (0) target = $region41
    $region40: #{tpu_custom_call.1} parent=1 // pred_region
      _
    $region41: #{tpu_custom_call.1} parent=1 // pred_fallthru
      _
    %v36 = vld [vmem:[%s0] sm:$0x3]
    %v37 = vld [vmem:[%s1] sm:$0xff]
    %v38 = vld [vmem:[%s1 + $0x8] sm:$0xff]
    %v39 = vld [vmem:[%s2] sm:$0x1]
    %v41 = vlaneseq
    %v42 = vshrl.u32 %v41, 7
    %v43 = vsub.s32 0, %v42
    %v44 = vrot.slane %v39, %v43
    %vm46 = vcmask 130048
    %v48 = vsel %vm46, %v36, 0
    %50 = vmatprep.subr.mxu0 0.0
    %51 = vmatpush1.msra.mxu0 %v37
    %52 = vmatprep.subr.mxu0 0.0
    %53 = vmatpush1.msra.mxu0 %v38
    %54 = vmatprep.subr.mxu0 0.0
    %55 = vmatpush1.msra.mxu0 0.0
    %56 = vmatprep.subr.mxu0 0.0
    %57 = vmatpush1.msra.mxu0 0.0
    %58 = vmatprep.subr.mxu0 0.0
    %59 = vmatpush1.msra.mxu0 0.0
    %60 = vmatprep.subr.mxu0 0.0
    %61 = vmatpush1.msra.mxu0 0.0
    %62 = vmatprep.subr.mxu0 0.0
    %63 = vmatpush1.msra.mxu0 0.0
    %64 = vmatprep.subr.mxu0 0.0
    %65 = vmatpush1.msra.mxu0 0.0
    %66 = vmatprep.subr.mxu0 0.0
    %67 = vmatpush1.msra.mxu0 0.0
    %68 = vmatprep.subr.mxu0 0.0
    %69 = vmatpush1.msra.mxu0 0.0
    %70 = vmatprep.subr.mxu0 0.0
    %71 = vmatpush1.msra.mxu0 0.0
    %72 = vmatprep.subr.mxu0 0.0
    %73 = vmatpush1.msra.mxu0 0.0
    %74 = vmatprep.subr.mxu0 0.0
    %75 = vmatpush1.msra.mxu0 0.0
    %76 = vmatprep.subr.mxu0 0.0
    %77 = vmatpush1.msra.mxu0 0.0
    %78 = vmatprep.subr.mxu0 0.0
    %79 = vmatpush1.msra.mxu0 0.0
    %80 = vmatprep.subr.mxu0 0.0
    %81 = vmatpush1.msra.mxu0 0.0
    %82 = vmatprep.subr.mxu0 0.0
    %83 = vmatpush1.msra.mxu0 0.0
    %84 = vmatprep.subr.mxu0 0.0
    %85 = vmatpush1.msra.mxu0 0.0
    %86 = vmatprep.subr.mxu0 0.0
    %87 = vmatpush1.msra.mxu0 0.0
    %88 = vmatprep.subr.mxu0 0.0
    %89 = vmatpush1.msra.mxu0 0.0
    %90 = vmatprep.subr.mxu0 0.0
    %91 = vmatpush1.msra.mxu0 0.0
    %92 = vmatprep.subr.mxu0 0.0
    %93 = vmatpush1.msra.mxu0 0.0
    %94 = vmatprep.subr.mxu0 0.0
    %95 = vmatpush1.msra.mxu0 0.0
    %96 = vmatprep.subr.mxu0 0.0
    %97 = vmatpush1.msra.mxu0 0.0
    %98 = vmatprep.subr.mxu0 0.0
    %99 = vmatpush1.msra.mxu0 0.0
    %100 = vmatprep.subr.mxu0 0.0
    %101 = vmatpush1.msra.mxu0 0.0
    %102 = vmatprep.subr.mxu0 0.0
    %103 = vmatpush1.msra.mxu0 0.0
    %104 = vmatprep.subr.mxu0 0.0
    %105 = vmatpush1.msra.mxu0 0.0
    %106 = vmatprep.subr.mxu0 0.0
    %107 = vmatpush1.msra.mxu0 0.0
    %108 = vmatprep.subr.mxu0 0.0
    %109 = vmatpush1.msra.mxu0 0.0
    %110 = vmatprep.subr.mxu0 0.0
    %111 = vmatpush1.msra.mxu0 0.0
    %112 = vmatprep.subr.mxu0 0.0
    %113 = vmatpush1.msra.mxu0 0.0
    %114 = vmatprep.mubr.f32.mxu0 0.0
    %115 = vmatmul.mubr.f32.gmra.mrb[0].mxu0 %v48
    %v116 = vpop.f32.mrb[0].mxu0
    %v117 = vadd.f32 %v44, %v116
    %v118 = vpop.f32.mrb[0].mxu0
    %119 = vdwg.mxu0
    %vm120 = vcmp.gt.f32.partialorder %v117, 0.0
    %v121 = vmin.f32 %v117, 0.0
    %v122 = vmul.f32 %v121, 1.442695
    %v123 = vpow.pop %v122
    %v124 = vsub.f32 %v123, 1.0
    %v125 = vsel %vm120, %v117, %v124
    %v126 = vld [vmem:[%s3] sm:$0xff]
    %v127 = vld [vmem:[%s3 + $0x8] sm:$0xff]
    %v128 = vld [vmem:[%s3 + $0x10] sm:$0xff]
    %v129 = vld [vmem:[%s3 + $0x18] sm:$0xff]
    %v130 = vld [vmem:[%s4] sm:$0x1]
    %v132 = vlaneseq
    %v133 = vshrl.u32 %v132, 7
    %v134 = vsub.s32 0, %v133
    %v135 = vrot.slane %v130, %v134
    %vm137 = vcmask 261120
    %v139 = vsel %vm137, %v125, 0
    %141 = vmatprep.subr.mxu0 0.0
    %142 = vmatpush1.msra.mxu0 %v126
    %143 = vmatprep.subr.mxu0 0.0
    %144 = vmatpush1.msra.mxu0 %v127
    %145 = vmatprep.subr.mxu0 0.0
    %146 = vmatpush1.msra.mxu0 %v128
    %147 = vmatprep.subr.mxu0 0.0
    %148 = vmatpush1.msra.mxu0 %v129
    %149 = vmatprep.subr.mxu0 0.0
    %150 = vmatpush1.msra.mxu0 0.0
    %151 = vmatprep.subr.mxu0 0.0
    %152 = vmatpush1.msra.mxu0 0.0
    %153 = vmatprep.subr.mxu0 0.0
    %154 = vmatpush1.msra.mxu0 0.0
    %155 = vmatprep.subr.mxu0 0.0
    %156 = vmatpush1.msra.mxu0 0.0
    %157 = vmatprep.subr.mxu0 0.0
    %158 = vmatpush1.msra.mxu0 0.0
    %159 = vmatprep.subr.mxu0 0.0
    %160 = vmatpush1.msra.mxu0 0.0
    %161 = vmatprep.subr.mxu0 0.0
    %162 = vmatpush1.msra.mxu0 0.0
    %163 = vmatprep.subr.mxu0 0.0
    %164 = vmatpush1.msra.mxu0 0.0
    %165 = vmatprep.subr.mxu0 0.0
    %166 = vmatpush1.msra.mxu0 0.0
    %167 = vmatprep.subr.mxu0 0.0
    %168 = vmatpush1.msra.mxu0 0.0
    %169 = vmatprep.subr.mxu0 0.0
    %170 = vmatpush1.msra.mxu0 0.0
    %171 = vmatprep.subr.mxu0 0.0
    %172 = vmatpush1.msra.mxu0 0.0
    %173 = vmatprep.subr.mxu0 0.0
    %174 = vmatpush1.msra.mxu0 0.0
    %175 = vmatprep.subr.mxu0 0.0
    %176 = vmatpush1.msra.mxu0 0.0
    %177 = vmatprep.subr.mxu0 0.0
    %178 = vmatpush1.msra.mxu0 0.0
    %179 = vmatprep.subr.mxu0 0.0
    %180 = vmatpush1.msra.mxu0 0.0
    %181 = vmatprep.subr.mxu0 0.0
    %182 = vmatpush1.msra.mxu0 0.0
    %183 = vmatprep.subr.mxu0 0.0
    %184 = vmatpush1.msra.mxu0 0.0
    %185 = vmatprep.subr.mxu0 0.0
    %186 = vmatpush1.msra.mxu0 0.0
    %187 = vmatprep.subr.mxu0 0.0
    %188 = vmatpush1.msra.mxu0 0.0
    %189 = vmatprep.subr.mxu0 0.0
    %190 = vmatpush1.msra.mxu0 0.0
    %191 = vmatprep.subr.mxu0 0.0
    %192 = vmatpush1.msra.mxu0 0.0
    %193 = vmatprep.subr.mxu0 0.0
    %194 = vmatpush1.msra.mxu0 0.0
    %195 = vmatprep.subr.mxu0 0.0
    %196 = vmatpush1.msra.mxu0 0.0
    %197 = vmatprep.subr.mxu0 0.0
    %198 = vmatpush1.msra.mxu0 0.0
    %199 = vmatprep.subr.mxu0 0.0
    %200 = vmatpush1.msra.mxu0 0.0
    %201 = vmatprep.subr.mxu0 0.0
    %202 = vmatpush1.msra.mxu0 0.0
    %203 = vmatprep.subr.mxu0 0.0
    %204 = vmatpush1.msra.mxu0 0.0
    %205 = vmatprep.mubr.f32.mxu0 0.0
    %206 = vmatmul.mubr.f32.gmra.mrb[0].mxu0 %v139
    %v207 = vpop.f32.mrb[0].mxu0
    %v208 = vadd.f32 %v135, %v207
    %v209 = vpop.f32.mrb[0].mxu0
    %210 = vdwg.mxu0
    %v211 = vadd.f32 %v208, %v36
    %v212 = vld [vmem:[%s9] sm:$0xff]
    %v213 = vld [vmem:[%s9 + $0x8] sm:$0xff]
    %v215 = vsel %vm46, %v211, 0
    %217 = vmatprep.subr.mxu0 0.0
    %218 = vmatpush1.msra.mxu0 %v212
    %219 = vmatprep.subr.mxu0 0.0
    %220 = vmatpush1.msra.mxu0 %v213
    %221 = vmatprep.subr.mxu0 0.0
    %222 = vmatpush1.msra.mxu0 0.0
    %223 = vmatprep.subr.mxu0 0.0
    %224 = vmatpush1.msra.mxu0 0.0
    %225 = vmatprep.subr.mxu0 0.0
    %226 = vmatpush1.msra.mxu0 0.0
    %227 = vmatprep.subr.mxu0 0.0
    %228 = vmatpush1.msra.mxu0 0.0
    %229 = vmatprep.subr.mxu0 0.0
    %230 = vmatpush1.msra.mxu0 0.0
    %231 = vmatprep.subr.mxu0 0.0
    %232 = vmatpush1.msra.mxu0 0.0
    %233 = vmatprep.subr.mxu0 0.0
    %234 = vmatpush1.msra.mxu0 0.0
    %235 = vmatprep.subr.mxu0 0.0
    %236 = vmatpush1.msra.mxu0 0.0
    %237 = vmatprep.subr.mxu0 0.0
    %238 = vmatpush1.msra.mxu0 0.0
    %239 = vmatprep.subr.mxu0 0.0
    %240 = vmatpush1.msra.mxu0 0.0
    %241 = vmatprep.subr.mxu0 0.0
    %242 = vmatpush1.msra.mxu0 0.0
    %243 = vmatprep.subr.mxu0 0.0
    %244 = vmatpush1.msra.mxu0 0.0
    %245 = vmatprep.subr.mxu0 0.0
    %246 = vmatpush1.msra.mxu0 0.0
    %247 = vmatprep.subr.mxu0 0.0
    %248 = vmatpush1.msra.mxu0 0.0
    %249 = vmatprep.subr.mxu0 0.0
    %250 = vmatpush1.msra.mxu0 0.0
    %251 = vmatprep.subr.mxu0 0.0
    %252 = vmatpush1.msra.mxu0 0.0
    %253 = vmatprep.subr.mxu0 0.0
    %254 = vmatpush1.msra.mxu0 0.0
    %255 = vmatprep.subr.mxu0 0.0
    %256 = vmatpush1.msra.mxu0 0.0
    %257 = vmatprep.subr.mxu0 0.0
    %258 = vmatpush1.msra.mxu0 0.0
    %259 = vmatprep.subr.mxu0 0.0
    %260 = vmatpush1.msra.mxu0 0.0
    %261 = vmatprep.subr.mxu0 0.0
    %262 = vmatpush1.msra.mxu0 0.0
    %263 = vmatprep.subr.mxu0 0.0
    %264 = vmatpush1.msra.mxu0 0.0
    %265 = vmatprep.subr.mxu0 0.0
    %266 = vmatpush1.msra.mxu0 0.0
    %267 = vmatprep.subr.mxu0 0.0
    %268 = vmatpush1.msra.mxu0 0.0
    %269 = vmatprep.subr.mxu0 0.0
    %270 = vmatpush1.msra.mxu0 0.0
    %271 = vmatprep.subr.mxu0 0.0
    %272 = vmatpush1.msra.mxu0 0.0
    %273 = vmatprep.subr.mxu0 0.0
    %274 = vmatpush1.msra.mxu0 0.0
    %275 = vmatprep.subr.mxu0 0.0
    %276 = vmatpush1.msra.mxu0 0.0
    %277 = vmatprep.subr.mxu0 0.0
    %278 = vmatpush1.msra.mxu0 0.0
    %279 = vmatprep.subr.mxu0 0.0
    %280 = vmatpush1.msra.mxu0 0.0
    %281 = vmatprep.mubr.f32.mxu0 0.0
    %282 = vmatmul.mubr.f32.gmra.mrb[0].mxu0 %v215
    %v283 = vpop.f32.mrb[0].mxu0
    %v284 = vadd.f32 0.0, %v283
    %v285 = vpop.f32.mrb[0].mxu0
    %286 = vdwg.mxu0
    %v287 = vld [vmem:[%s5] sm:$0xff]
    %v288 = vld [vmem:[%s5 + $0x8] sm:$0xff]
    %v289 = vld [vmem:[%s6] sm:$0x1]
    %v291 = vlaneseq
    %v292 = vshrl.u32 %v291, 7
    %v293 = vsub.s32 0, %v292
    %v294 = vrot.slane %v289, %v293
    %v297 = vsel %vm46, %v284, 0
    %299 = vmatprep.subr.mxu0 0.0
    %300 = vmatpush1.msra.mxu0 %v287
    %301 = vmatprep.subr.mxu0 0.0
    %302 = vmatpush1.msra.mxu0 %v288
    %303 = vmatprep.subr.mxu0 0.0
    %304 = vmatpush1.msra.mxu0 0.0
    %305 = vmatprep.subr.mxu0 0.0
    %306 = vmatpush1.msra.mxu0 0.0
    %307 = vmatprep.subr.mxu0 0.0
    %308 = vmatpush1.msra.mxu0 0.0
    %309 = vmatprep.subr.mxu0 0.0
    %310 = vmatpush1.msra.mxu0 0.0
    %311 = vmatprep.subr.mxu0 0.0
    %312 = vmatpush1.msra.mxu0 0.0
    %313 = vmatprep.subr.mxu0 0.0
    %314 = vmatpush1.msra.mxu0 0.0
    %315 = vmatprep.subr.mxu0 0.0
    %316 = vmatpush1.msra.mxu0 0.0
    %317 = vmatprep.subr.mxu0 0.0
    %318 = vmatpush1.msra.mxu0 0.0
    %319 = vmatprep.subr.mxu0 0.0
    %320 = vmatpush1.msra.mxu0 0.0
    %321 = vmatprep.subr.mxu0 0.0
    %322 = vmatpush1.msra.mxu0 0.0
    %323 = vmatprep.subr.mxu0 0.0
    %324 = vmatpush1.msra.mxu0 0.0
    %325 = vmatprep.subr.mxu0 0.0
    %326 = vmatpush1.msra.mxu0 0.0
    %327 = vmatprep.subr.mxu0 0.0
    %328 = vmatpush1.msra.mxu0 0.0
    %329 = vmatprep.subr.mxu0 0.0
    %330 = vmatpush1.msra.mxu0 0.0
    %331 = vmatprep.subr.mxu0 0.0
    %332 = vmatpush1.msra.mxu0 0.0
    %333 = vmatprep.subr.mxu0 0.0
    %334 = vmatpush1.msra.mxu0 0.0
    %335 = vmatprep.subr.mxu0 0.0
    %336 = vmatpush1.msra.mxu0 0.0
    %337 = vmatprep.subr.mxu0 0.0
    %338 = vmatpush1.msra.mxu0 0.0
    %339 = vmatprep.subr.mxu0 0.0
    %340 = vmatpush1.msra.mxu0 0.0
    %341 = vmatprep.subr.mxu0 0.0
    %342 = vmatpush1.msra.mxu0 0.0
    %343 = vmatprep.subr.mxu0 0.0
    %344 = vmatpush1.msra.mxu0 0.0
    %345 = vmatprep.subr.mxu0 0.0
    %346 = vmatpush1.msra.mxu0 0.0
    %347 = vmatprep.subr.mxu0 0.0
    %348 = vmatpush1.msra.mxu0 0.0
    %349 = vmatprep.subr.mxu0 0.0
    %350 = vmatpush1.msra.mxu0 0.0
    %351 = vmatprep.subr.mxu0 0.0
    %352 = vmatpush1.msra.mxu0 0.0
    %353 = vmatprep.subr.mxu0 0.0
    %354 = vmatpush1.msra.mxu0 0.0
    %355 = vmatprep.subr.mxu0 0.0
    %356 = vmatpush1.msra.mxu0 0.0
    %357 = vmatprep.subr.mxu0 0.0
    %358 = vmatpush1.msra.mxu0 0.0
    %359 = vmatprep.subr.mxu0 0.0
    %360 = vmatpush1.msra.mxu0 0.0
    %361 = vmatprep.subr.mxu0 0.0
    %362 = vmatpush1.msra.mxu0 0.0
    %363 = vmatprep.mubr.f32.mxu0 0.0
    %364 = vmatmul.mubr.f32.gmra.mrb[0].mxu0 %v297
    %v365 = vpop.f32.mrb[0].mxu0
    %v366 = vadd.f32 %v294, %v365
    %v367 = vpop.f32.mrb[0].mxu0
    %368 = vdwg.mxu0
    %vm369 = vcmp.gt.f32.partialorder %v366, 0.0
    %v370 = vmin.f32 %v366, 0.0
    %v371 = vmul.f32 %v370, 1.442695
    %v372 = vpow.pop %v371
    %v373 = vsub.f32 %v372, 1.0
    %v374 = vsel %vm369, %v366, %v373
    %v375 = vld [vmem:[%s7] sm:$0xff]
    %v376 = vld [vmem:[%s7 + $0x8] sm:$0xff]
    %v377 = vld [vmem:[%s7 + $0x10] sm:$0xff]
    %v378 = vld [vmem:[%s7 + $0x18] sm:$0xff]
    %v379 = vld [vmem:[%s8] sm:$0x1]
    %v381 = vlaneseq
    %v382 = vshrl.u32 %v381, 7
    %v383 = vsub.s32 0, %v382
    %v384 = vrot.slane %v379, %v383
    %v387 = vsel %vm137, %v374, 0
    %389 = vmatprep.subr.mxu0 0.0
    %390 = vmatpush1.msra.mxu0 %v375
    %391 = vmatprep.subr.mxu0 0.0
    %392 = vmatpush1.msra.mxu0 %v376
    %393 = vmatprep.subr.mxu0 0.0
    %394 = vmatpush1.msra.mxu0 %v377
    %395 = vmatprep.subr.mxu0 0.0
    %396 = vmatpush1.msra.mxu0 %v378
    %397 = vmatprep.subr.mxu0 0.0
    %398 = vmatpush1.msra.mxu0 0.0
    %399 = vmatprep.subr.mxu0 0.0
    %400 = vmatpush1.msra.mxu0 0.0
    %401 = vmatprep.subr.mxu0 0.0
    %402 = vmatpush1.msra.mxu0 0.0
    %403 = vmatprep.subr.mxu0 0.0
    %404 = vmatpush1.msra.mxu0 0.0
    %405 = vmatprep.subr.mxu0 0.0
    %406 = vmatpush1.msra.mxu0 0.0
    %407 = vmatprep.subr.mxu0 0.0
    %408 = vmatpush1.msra.mxu0 0.0
    %409 = vmatprep.subr.mxu0 0.0
    %410 = vmatpush1.msra.mxu0 0.0
    %411 = vmatprep.subr.mxu0 0.0
    %412 = vmatpush1.msra.mxu0 0.0
    %413 = vmatprep.subr.mxu0 0.0
    %414 = vmatpush1.msra.mxu0 0.0
    %415 = vmatprep.subr.mxu0 0.0
    %416 = vmatpush1.msra.mxu0 0.0
    %417 = vmatprep.subr.mxu0 0.0
    %418 = vmatpush1.msra.mxu0 0.0
    %419 = vmatprep.subr.mxu0 0.0
    %420 = vmatpush1.msra.mxu0 0.0
    %421 = vmatprep.subr.mxu0 0.0
    %422 = vmatpush1.msra.mxu0 0.0
    %423 = vmatprep.subr.mxu0 0.0
    %424 = vmatpush1.msra.mxu0 0.0
    %425 = vmatprep.subr.mxu0 0.0
    %426 = vmatpush1.msra.mxu0 0.0
    %427 = vmatprep.subr.mxu0 0.0
    %428 = vmatpush1.msra.mxu0 0.0
    %429 = vmatprep.subr.mxu0 0.0
    %430 = vmatpush1.msra.mxu0 0.0
    %431 = vmatprep.subr.mxu0 0.0
    %432 = vmatpush1.msra.mxu0 0.0
    %433 = vmatprep.subr.mxu0 0.0
    %434 = vmatpush1.msra.mxu0 0.0
    %435 = vmatprep.subr.mxu0 0.0
    %436 = vmatpush1.msra.mxu0 0.0
    %437 = vmatprep.subr.mxu0 0.0
    %438 = vmatpush1.msra.mxu0 0.0
    %439 = vmatprep.subr.mxu0 0.0
    %440 = vmatpush1.msra.mxu0 0.0
    %441 = vmatprep.subr.mxu0 0.0
    %442 = vmatpush1.msra.mxu0 0.0
    %443 = vmatprep.subr.mxu0 0.0
    %444 = vmatpush1.msra.mxu0 0.0
    %445 = vmatprep.subr.mxu0 0.0
    %446 = vmatpush1.msra.mxu0 0.0
    %447 = vmatprep.subr.mxu0 0.0
    %448 = vmatpush1.msra.mxu0 0.0
    %449 = vmatprep.subr.mxu0 0.0
    %450 = vmatpush1.msra.mxu0 0.0
    %451 = vmatprep.subr.mxu0 0.0
    %452 = vmatpush1.msra.mxu0 0.0
    %453 = vmatprep.mubr.f32.mxu0 0.0
    %454 = vmatmul.mubr.f32.gmra.mrb[0].mxu0 %v387
    %v455 = vpop.f32.mrb[0].mxu0
    %v456 = vadd.f32 %v384, %v455
    %v457 = vpop.f32.mrb[0].mxu0
    %458 = vdwg.mxu0
    %v459 = vadd.f32 %v456, %v284
    %vm460 = vcmask 123904
    %461 = vst.msk [vmem:[#allocation3] sm:$0x3] %vm460, %v459
    // Predicated region
    $region42: #{tpu_custom_call.1} parent=1 // pred_check
      _
    $region43: #{tpu_custom_call.1} parent=1 // pred_check_branch
      %463 = sbr.rel (0) target = $region45
    $region44: #{tpu_custom_call.1} parent=1 // pred_region
      %s465 = ssub.s32 32, 32
      %466 = vsyncadd [#allocation4], %s465
      %s468 = sshll.u32 [#allocation3], 4
      %s469 = int_to_ptr.vmem [resolvable:$true] %s468
      %471 = dma.vmem_to_hbm [thread:$0]  %s469, 32, %s10, [#allocation4]
    $region45: #{tpu_custom_call.1} parent=1 // pred_fallthru
      _
    // Predicated region
    $region46: #{tpu_custom_call.1} parent=1 // pred_check
      _
    $region47: #{tpu_custom_call.1} parent=1 // pred_check_branch
      %473 = sbr.rel (0) target = $region49
    $region48: #{tpu_custom_call.1} parent=1 // pred_region
      %474 = dma.done [#allocation4], 32
    $region49: #{tpu_custom_call.1} parent=1 // pred_fallthru
      _
    %475 = vsyncpa [#allocation4], 1

</llo_original>
